<compile_context>
chip_gen: v6e
topology: v6e:2x2x1
jax: 0.10.0
libtpu: 0.0.40
codegen_flags: <defaults>
</compile_context>

<pallas_src>
import functools

import jax
import jax.numpy as jnp
from jax.experimental import pallas as pl
from jax.experimental.pallas import tpu as pltpu


def _round_up(x, m):
    return ((x + m - 1) // m) * m


# --------------------------------------------------------------------------
# Kernels
# --------------------------------------------------------------------------
def _fused_head_kernel(obs_ref, w_ref, b_ref, out_ref):
    """Resident-weight path: [TB, D] @ [D, Np] + [1, Np] -> [TB, Np]."""
    acc = jnp.dot(obs_ref[...], w_ref[...], preferred_element_type=jnp.float32)
    out_ref[...] = (acc + b_ref[...]).astype(out_ref.dtype)


def _fused_head_kernel_ktiled(obs_ref, w_ref, b_ref, out_ref, acc_ref):
    """K-tiled path for large D: accumulate [TB, Np] in f32 VMEM scratch."""
    k = pl.program_id(1)

    @pl.when(k == 0)
    def _():
        acc_ref[...] = jnp.zeros_like(acc_ref)

    acc_ref[...] += jnp.dot(obs_ref[...], w_ref[...],
                            preferred_element_type=jnp.float32)

    @pl.when(k == pl.num_programs(1) - 1)
    def _():
        out_ref[...] = (acc_ref[...] + b_ref[...]).astype(out_ref.dtype)


# --------------------------------------------------------------------------
# Wrapper
# --------------------------------------------------------------------------
def prepare_params(w_actor, b_actor, w_critic, b_critic):
    """Fuse the two heads into one lane-padded [D, Np] weight / [1, Np] bias.

    Called ONCE at init time (hoisted out of the per-step forward so no
    per-call pad/scatter XLA ops).  Everything is stored in f32.
    """
    D, A = w_actor.shape
    C = w_critic.shape[1]
    N = A + C
    Np = _round_up(N, 128)
    w_fused = jnp.zeros((D, Np), dtype=jnp.float32)
    w_fused = w_fused.at[:, :A].set(w_actor.astype(jnp.float32))
    w_fused = w_fused.at[:, A:N].set(w_critic.astype(jnp.float32))
    b_fused = jnp.zeros((1, Np), dtype=jnp.float32)
    b_fused = b_fused.at[:, :A].set(b_actor.reshape(1, A).astype(jnp.float32))
    b_fused = b_fused.at[:, A:N].set(b_critic.reshape(1, C).astype(jnp.float32))
    return w_fused, b_fused


def _choose_tb(B):
    """Batch tile (sublane-aligned): even #grid-steps >= 2 when worthwhile
    (v7x megacore balance), minimal ragged-tail waste, TB <= 512."""
    if B <= 64:
        return B                                   # launch-bound; one full tile
    if B <= 1024:
        return _round_up(pl.cdiv(B, 2), 8)         # grid = 2 (even, balanced)
    best_tb, best_key = None, None
    for tb in (512, 448, 384, 320, 256, 192, 128):
        steps = pl.cdiv(B, tb)
        pad = steps * tb - B
        key = (pad, steps % 2, steps)              # min pad, prefer even steps
        if best_key is None or key < best_key:
            best_key, best_tb = key, tb
    return best_tb


@functools.partial(
    jax.jit,
    static_argnames=("action_size", "critic_size", "out_dtype",
                     "force_k_tiling"))
def actor_critic_forward(observation, w_fused, b_fused, *,
                         action_size, critic_size=1,
                         out_dtype=None, force_k_tiling=False):
    """Forward pass of OneLayerActorCritic.

    observation: [B, D] float32 (or bf16)
    w_fused:     [D, Np] float32 (from prepare_params)
    b_fused:     [1, Np] float32
    returns (logits [B, A], value [B, C])
    """
    B, D = observation.shape
    Np = w_fused.shape[1]
    A, C = action_size, critic_size
    N = A + C
    out_dtype = observation.dtype if out_dtype is None else out_dtype

    TB = _choose_tb(B)
    grid_b = pl.cdiv(B, TB)

    # VMEM guard: keep the resident-weight fast path while the weight block
    # comfortably fits (v7x has only 64 MiB physical VMEM); otherwise tile K.
    w_bytes = D * Np * 4
    TK = None
    if force_k_tiling or w_bytes > (12 << 20):
        for cand in (2048, 1024, 512, 256, 128):
            if D > cand and D % cand == 0:
                TK = cand
                break
    # TODO(synk): if D is huge and not a multiple of 128, zero-pad D (the MXU
    # contraction dim) in prepare_params instead of falling back to the
    # resident-weight path.

    out_shape = jax.ShapeDtypeStruct((B, Np), out_dtype)
    out_bytes = B * Np * jnp.dtype(out_dtype).itemsize

    if TK is None:
        # ---- resident-weight path: weights/bias loaded once, stay in VMEM --
        needed = (2 * (TB * D + TB * Np) + 2 * (D * Np + Np)) * 4
        vmem_limit = int(min(max(2 * needed, 32 << 20), 64 << 20))
        out = pl.pallas_call(
            _fused_head_kernel,
            out_shape=out_shape,
            grid=(grid_b,),
            in_specs=[
                pl.BlockSpec((TB, D), lambda i: (i, 0)),      # obs streams
                pl.BlockSpec((D, Np), lambda i: (0, 0)),      # resident W
                pl.BlockSpec((1, Np), lambda i: (0, 0)),      # resident bias
            ],
            out_specs=pl.BlockSpec((TB, Np), lambda i: (i, 0)),
            compiler_params=pltpu.CompilerParams(
                dimension_semantics=("parallel",),
                vmem_limit_bytes=vmem_limit),
            cost_estimate=pl.CostEstimate(
                flops=2 * grid_b * TB * D * Np,
                transcendentals=0,
                bytes_accessed=4 * (B * D + D * Np + Np) + out_bytes),
        )(observation, w_fused, b_fused)
    else:
        # ---- K-tiled fallback for large D (v7x VMEM guard) -----------------
        grid_k = D // TK
        needed = (2 * (TB * TK + TK * Np + Np) + 3 * TB * Np) * 4
        vmem_limit = int(min(max(2 * needed, 32 << 20), 64 << 20))
        out = pl.pallas_call(
            _fused_head_kernel_ktiled,
            out_shape=out_shape,
            grid=(grid_b, grid_k),
            in_specs=[
                pl.BlockSpec((TB, TK), lambda i, k: (i, k)),
                pl.BlockSpec((TK, Np), lambda i, k: (k, 0)),
                pl.BlockSpec((1, Np), lambda i, k: (0, 0)),
            ],
            out_specs=pl.BlockSpec((TB, Np), lambda i, k: (i, 0)),
            scratch_shapes=[pltpu.VMEM((TB, Np), jnp.float32)],
            compiler_params=pltpu.CompilerParams(
                dimension_semantics=("parallel", "arbitrary"),
                vmem_limit_bytes=vmem_limit),
            cost_estimate=pl.CostEstimate(
                flops=2 * grid_b * TB * D * Np,
                transcendentals=0,
                bytes_accessed=4 * (B * D + D * Np + Np) + out_bytes),
        )(observation, w_fused, b_fused)

    # Lane slices happen inside jit; XLA fuses them into one pass over `out`.
    logits = out[:, :A]
    value = out[:, A:N]
    # TODO(synk): detach_actor / detach_critic only affect autograd
    # (stop_gradient on the observation); they are no-ops for forward values.
    return logits, value


# --------------------------------------------------------------------------
# Param init (mimics torch init(nn.Linear, gain))
# --------------------------------------------------------------------------
def _orthogonal(key, rows, cols, gain):
    n = max(rows, cols)
    a = jax.random.normal(key, (n, n), dtype=jnp.float32)
    q, r = jnp.linalg.qr(a)
    q = q * jnp.sign(jnp.diag(r))[None, :]
    return gain * q[:rows, :cols]


def make_params(key, input_size, action_size, critic_size=1):
    k_a, k_c = jax.random.split(key)
    w_actor = _orthogonal(k_a, input_size, action_size, gain=0.01)   # [D, A]
    b_actor = jnp.zeros((1, action_size), dtype=jnp.float32)
    w_critic = _orthogonal(k_c, input_size, critic_size, gain=1.0)   # [D, C]
    b_critic = jnp.zeros((1, critic_size), dtype=jnp.float32)
    return w_actor, b_actor, w_critic, b_critic


if __name__ == "__main__":
    key = jax.random.PRNGKey(0)
    k_obs, k_params = jax.random.split(key)

    batch, input_size, action_size, critic_size = 8, 32, 16, 1
    observation = jax.random.normal(k_obs, (batch, input_size), dtype=jnp.float32)
    w_a, b_a, w_c, b_c = make_params(k_params, input_size, action_size, critic_size)
    w_fused, b_fused = prepare_params(w_a, b_a, w_c, b_c)   # hoisted, once

    # --- small case ---------------------------------------------------------
    logits, value = actor_critic_forward(
        observation, w_fused, b_fused,
        action_size=action_size, critic_size=critic_size)
    jax.block_until_ready((logits, value))
    assert logits.shape == (batch, action_size)
    assert value.shape == (batch, critic_size)
    assert jnp.allclose(logits, observation @ w_a + b_a, atol=1e-5, rtol=1e-5)
    assert jnp.allclose(value, observation @ w_c + b_c, atol=1e-5, rtol=1e-5)

    # --- multi-tile ragged batch (grid > 1, non-divisible tail) -------------
    big_B = 1200
    obs_big = jax.random.normal(jax.random.PRNGKey(3), (big_B, input_size),
                                dtype=jnp.float32)
    lg, vl = actor_critic_forward(
        obs_big, w_fused, b_fused,
        action_size=action_size, critic_size=critic_size)
    jax.block_until_ready((lg, vl))
    assert jnp.allclose(lg, obs_big @ w_a + b_a, atol=1e-4, rtol=1e-4)
    assert jnp.allclose(vl, obs_big @ w_c + b_c, atol=1e-4, rtol=1e-4)

    # --- bf16 output path (halves dominant padded-output HBM write) ---------
    lg16, vl16 = actor_critic_forward(
        obs_big, w_fused, b_fused,
        action_size=action_size, critic_size=critic_size,
        out_dtype=jnp.bfloat16)
    jax.block_until_ready((lg16, vl16))
    assert lg16.dtype == jnp.bfloat16 and vl16.dtype == jnp.bfloat16
    assert jnp.allclose(lg16.astype(jnp.float32), obs_big @ w_a + b_a,
                        atol=5e-2, rtol=5e-2)
    assert jnp.allclose(vl16.astype(jnp.float32), obs_big @ w_c + b_c,
                        atol=5e-2, rtol=5e-2)

    # --- K-tiled fallback path (forced, validates the large-D VMEM guard) ---
    D2 = 512
    w_a2, b_a2, w_c2, b_c2 = make_params(jax.random.PRNGKey(7), D2,
                                         action_size, critic_size)
    wf2, bf2 = prepare_params(w_a2, b_a2, w_c2, b_c2)
    obs2 = jax.random.normal(jax.random.PRNGKey(11), (64, D2), dtype=jnp.float32)
    lg2, vl2 = actor_critic_forward(
        obs2, wf2, bf2,
        action_size=action_size, critic_size=critic_size,
        force_k_tiling=True)
    jax.block_until_ready((lg2, vl2))
    assert jnp.allclose(lg2, obs2 @ w_a2 + b_a2, atol=5e-4, rtol=5e-4)
    assert jnp.allclose(vl2, obs2 @ w_c2 + b_c2, atol=5e-4, rtol=5e-4)

    print("KERNEL_OK")
</pallas_src>

<mosaic_0001>
module attributes {stable_mosaic.version = 11 : i64} {
  func.func @_fused_head_kernel(%arg0: i32, %arg1: memref<8x32xf32, #tpu.memory_space<vmem>>, %arg2: memref<32x128xf32, #tpu.memory_space<vmem>>, %arg3: memref<1x128xf32, #tpu.memory_space<vmem>>, %arg4: memref<8x128xf32, #tpu.memory_space<vmem>>) attributes {dimension_semantics = [#tpu.dimension_semantics<parallel>], iteration_bounds = array<i64: 1>, scalar_prefetch = 0 : i64, scratch_operands = 0 : i64, tpu.core_type = #tpu.core_type<tc>, window_params = [{transform_indices = @transform_0, window_bounds = array<i64: 8, 32>}, {pipeline_mode = #tpu.pipeline_mode<synchronous>, transform_indices = @transform_1, window_bounds = array<i64: 32, 128>}, {pipeline_mode = #tpu.pipeline_mode<synchronous>, transform_indices = @transform_2, window_bounds = array<i64: 1, 128>}, {transform_indices = @transform_3, window_bounds = array<i64: 8, 128>}]} {
    %c0 = arith.constant 0 : index
    %c0_0 = arith.constant 0 : index
    %0 = vector.load %arg1[%c0, %c0_0] : memref<8x32xf32, #tpu.memory_space<vmem>>, vector<8x32xf32>
    %c0_1 = arith.constant 0 : index
    %c0_2 = arith.constant 0 : index
    %1 = vector.load %arg2[%c0_1, %c0_2] : memref<32x128xf32, #tpu.memory_space<vmem>>, vector<32x128xf32>
    %cst = arith.constant dense<0.000000e+00> : vector<8x128xf32>
    %2 = tpu.matmul %0, %1, %cst {dimension_numbers = #tpu.dot_dimension_numbers<[1], [0], [0], [1], [0, 0, 1, 1], [], []>} : vector<8x32xf32>, vector<32x128xf32>, vector<8x128xf32> -> vector<8x128xf32>
    %c0_3 = arith.constant 0 : index
    %c0_4 = arith.constant 0 : index
    %3 = vector.load %arg3[%c0_3, %c0_4] : memref<1x128xf32, #tpu.memory_space<vmem>>, vector<1x128xf32>
    %4 = vector.broadcast %3 : vector<1x128xf32> to vector<8x128xf32>
    %5 = arith.addf %2, %4 : vector<8x128xf32>
    %c0_5 = arith.constant 0 : index
    %c0_6 = arith.constant 0 : index
    %6 = vector.load %arg4[%c0_5, %c0_6] : memref<8x128xf32, #tpu.memory_space<vmem>>, vector<8x128xf32>
    tpu.vector_store %arg4[%c0_5, %c0_6], %5 {strides = array<i32>} : memref<8x128xf32, #tpu.memory_space<vmem>>, vector<8x128xf32>,
    return
  }
  func.func @transform_0(%arg0: i32) -> (i32, i32) {
    %c0_i32 = arith.constant 0 : i32
    %c0_i32_0 = arith.constant 0 : i32
    return %arg0, %c0_i32 : i32, i32
  }
  func.func @transform_1(%arg0: i32) -> (i32, i32) {
    %c0_i32 = arith.constant 0 : i32
    %c0_i32_0 = arith.constant 0 : i32
    %c0_i32_1 = arith.constant 0 : i32
    return %c0_i32, %c0_i32_0 : i32, i32
  }
  func.func @transform_2(%arg0: i32) -> (i32, i32) {
    %c0_i32 = arith.constant 0 : i32
    %c0_i32_0 = arith.constant 0 : i32
    %c0_i32_1 = arith.constant 0 : i32
    return %c0_i32, %c0_i32_0 : i32, i32
  }
  func.func @transform_3(%arg0: i32) -> (i32, i32) {
    %c0_i32 = arith.constant 0 : i32
    %c0_i32_0 = arith.constant 0 : i32
    return %arg0, %c0_i32 : i32, i32
  }
}

</mosaic_0001>

<llo_original>
// kernel: actor_critic_forward.1
$region0: #{actor_critic_forward.1}
  #allocation0 [shape = 'u32[]', space=smem, size = 0x4, offset = 0x4, fixed_abs, tag = 'smem constant byte address 0x4 - core index']
  #allocation1 [shape = 'u32[144,128]{1,0:T(1,128)}', space=vmem, size = 0x12000, scoped, tag = 'internal scratch']
  %s0 = inlined_call_operand.hbm [shape: f32[8,32], index: 0, kind: input, shape index: {}]
  %s1 = inlined_call_operand.hbm [shape: f32[32,128], index: 1, kind: input, shape index: {}]
  %s2 = inlined_call_operand.vmem [shape: f32[1,128], index: 2, kind: input, shape index: {}]
  %s3 = inlined_call_operand.vmem [shape: f32[8,128], index: 3, kind: output, shape index: {}]
  %s4 = sld [smem:[#allocation0]]
  $region30: #{actor_critic_forward.1} parent=0
    _
  %s6 = ssub.s32 1, %s4
  %s7 = scalar_select 0, %s6, %s4
  $region1: #{actor_critic_forward.1} parent=0
    #allocation2 [shape = 'u8[4096]{0}', space=vmem, size = 0x1000, scoped, tag = 'input window, operand 0, single buffered']
    #allocation3 [shape = 's32[1]{0}', space=sflag, size = 0x4, scoped, tag = 'scoped memory for actor_critic_forward.1']
    #allocation4 [shape = 'u8[16384]{0}', space=vmem, size = 0x4000, scoped, tag = 'input window, operand 1, single buffered']
    #allocation5 [shape = 's32[1]{0}', space=sflag, size = 0x4, scoped, tag = 'scoped memory for actor_critic_forward.1']
    %8 = vsyncpa [#allocation3], 0
    %9 = vsyncpa [#allocation5], 0
    // Predicated region
    $region2: #{actor_critic_forward.1} parent=1 // pred_check
      _
    $region3: #{actor_critic_forward.1} parent=1 // pred_check_branch
      %11 = sbr.rel (0) target = $region5
    $region4: #{actor_critic_forward.1} parent=1 // pred_region
      %s13 = ssub.s32 128, 128
      %14 = vsyncadd [#allocation3], %s13
      %s16 = sshll.u32 [#allocation2], 4
      %s17 = int_to_ptr.vmem [resolvable:$true] %s16
      %19 = dma.hbm_to_vmem [thread:$0]  %s0, 128, %s17, [#allocation3]
    $region5: #{actor_critic_forward.1} parent=1 // pred_fallthru
      _
    // Predicated region
    $region6: #{actor_critic_forward.1} parent=1 // pred_check
      _
    $region7: #{actor_critic_forward.1} parent=1 // pred_check_branch
      %21 = sbr.rel (0) target = $region9
    $region8: #{actor_critic_forward.1} parent=1 // pred_region
      %s23 = ssub.s32 512, 512
      %24 = vsyncadd [#allocation5], %s23
      %s25 = sshll.u32 [#allocation4], 4
      %s26 = int_to_ptr.vmem [resolvable:$true] %s25
      %31 = dma.hbm_to_vmem [thread:$0]  %s1, 512, %s26, [#allocation5], 128, 128, 8
    $region9: #{actor_critic_forward.1} parent=1 // pred_fallthru
      _
    // Predicated region
    $region10: #{actor_critic_forward.1} parent=1 // pred_check
      _
    $region11: #{actor_critic_forward.1} parent=1 // pred_check_branch
      %33 = sbr.rel (0) target = $region13
    $region12: #{actor_critic_forward.1} parent=1 // pred_region
      _
    $region13: #{actor_critic_forward.1} parent=1 // pred_fallthru
      _
    // Predicated region
    $region14: #{actor_critic_forward.1} parent=1 // pred_check
      _
    $region15: #{actor_critic_forward.1} parent=1 // pred_check_branch
      %35 = sbr.rel (0) target = $region17
    $region16: #{actor_critic_forward.1} parent=1 // pred_region
      %36 = dma.done [#allocation3], 128
    $region17: #{actor_critic_forward.1} parent=1 // pred_fallthru
      _
    // Predicated region
    $region18: #{actor_critic_forward.1} parent=1 // pred_check
      _
    $region19: #{actor_critic_forward.1} parent=1 // pred_check_branch
      %38 = sbr.rel (0) target = $region21
    $region20: #{actor_critic_forward.1} parent=1 // pred_region
      %39 = dma.done [#allocation5], 512
    $region21: #{actor_critic_forward.1} parent=1 // pred_fallthru
      _
    %v40 = vld [vmem:[#allocation2] sm:$0xff]
    %v41 = vld [vmem:[#allocation4] sm:$0xff]
    %v42 = vld [vmem:[#allocation4 + $0x8] sm:$0xff]
    %v43 = vld [vmem:[#allocation4 + $0x10] sm:$0xff]
    %v44 = vld [vmem:[#allocation4 + $0x18] sm:$0xff]
    %v45 = vld [vmem:[%s2] sm:$0x1]
    %v47 = vlaneseq
    %v48 = vshrl.u32 %v47, 7
    %v49 = vsub.s32 0, %v48
    %v50 = vrot.slane %v45, %v49
    %vm52 = vcmask 261120
    %v54 = vsel %vm52, %v40, 0
    %56 = vmatprep.subr.mxu0 0.0
    %57 = vmatpush1.msra.mxu0 0.0
    %58 = vmatprep.subr.mxu0 0.0
    %59 = vmatpush1.msra.mxu0 0.0
    %60 = vmatprep.subr.mxu0 0.0
    %61 = vmatpush1.msra.mxu0 0.0
    %62 = vmatprep.subr.mxu0 0.0
    %63 = vmatpush1.msra.mxu0 0.0
    %64 = vmatprep.subr.mxu0 0.0
    %65 = vmatpush1.msra.mxu0 0.0
    %66 = vmatprep.subr.mxu0 0.0
    %67 = vmatpush1.msra.mxu0 0.0
    %68 = vmatprep.subr.mxu0 0.0
    %69 = vmatpush1.msra.mxu0 0.0
    %70 = vmatprep.subr.mxu0 0.0
    %71 = vmatpush1.msra.mxu0 0.0
    %72 = vmatprep.subr.mxu0 0.0
    %73 = vmatpush1.msra.mxu0 0.0
    %74 = vmatprep.subr.mxu0 0.0
    %75 = vmatpush1.msra.mxu0 0.0
    %76 = vmatprep.subr.mxu0 0.0
    %77 = vmatpush1.msra.mxu0 0.0
    %78 = vmatprep.subr.mxu0 0.0
    %79 = vmatpush1.msra.mxu0 0.0
    %80 = vmatprep.subr.mxu0 0.0
    %81 = vmatpush1.msra.mxu0 %v44
    %82 = vmatprep.subr.mxu0 0.0
    %83 = vmatpush1.msra.mxu0 %v43
    %84 = vmatprep.subr.mxu0 0.0
    %85 = vmatpush1.msra.mxu0 %v42
    %86 = vmatprep.subr.mxu0 0.0
    %87 = vmatpush1.msra.mxu0 %v41
    %88 = vmatprep.subr.mxu0 0.0
    %89 = vmatpush2.msra.mxu0 0.0
    %90 = vmatprep.subr.mxu0 0.0
    %91 = vmatpush2.msra.mxu0 0.0
    %92 = vmatprep.subr.mxu0 0.0
    %93 = vmatpush2.msra.mxu0 0.0
    %94 = vmatprep.subr.mxu0 0.0
    %95 = vmatpush2.msra.mxu0 0.0
    %96 = vmatprep.subr.mxu0 0.0
    %97 = vmatpush2.msra.mxu0 0.0
    %98 = vmatprep.subr.mxu0 0.0
    %99 = vmatpush2.msra.mxu0 0.0
    %100 = vmatprep.subr.mxu0 0.0
    %101 = vmatpush2.msra.mxu0 0.0
    %102 = vmatprep.subr.mxu0 0.0
    %103 = vmatpush2.msra.mxu0 0.0
    %104 = vmatprep.subr.mxu0 0.0
    %105 = vmatpush2.msra.mxu0 0.0
    %106 = vmatprep.subr.mxu0 0.0
    %107 = vmatpush2.msra.mxu0 0.0
    %108 = vmatprep.subr.mxu0 0.0
    %109 = vmatpush2.msra.mxu0 0.0
    %110 = vmatprep.subr.mxu0 0.0
    %111 = vmatpush2.msra.mxu0 0.0
    %112 = vmatprep.subr.mxu0 0.0
    %113 = vmatpush2.msra.mxu0 0.0
    %114 = vmatprep.subr.mxu0 0.0
    %115 = vmatpush2.msra.mxu0 0.0
    %116 = vmatprep.subr.mxu0 0.0
    %117 = vmatpush2.msra.mxu0 0.0
    %118 = vmatprep.subr.mxu0 0.0
    %119 = vmatpush2.msra.mxu0 0.0
    %120 = vmatprep.mubr.f32.mxu0 0.0
    %121 = vmatmul.mubr.f32.gmra.mxu0 %v54
    %v122 = vpop.f32.mrf.mxu0
    %v123 = vadd.f32 %v50, %v122
    %v124 = vpop.f32.mrf.mxu0
    %125 = vdwg.mxu0
    %126 = vst [vmem:[%s3] sm:$0xff] %v123
    // Predicated region
    $region22: #{actor_critic_forward.1} parent=1 // pred_check
      _
    $region23: #{actor_critic_forward.1} parent=1 // pred_check_branch
      %128 = sbr.rel (0) target = $region25
    $region24: #{actor_critic_forward.1} parent=1 // pred_region
      _
    $region25: #{actor_critic_forward.1} parent=1 // pred_fallthru
      _
    // Predicated region
    $region26: #{actor_critic_forward.1} parent=1 // pred_check
      _
    $region27: #{actor_critic_forward.1} parent=1 // pred_check_branch
      %130 = sbr.rel (0) target = $region29
    $region28: #{actor_critic_forward.1} parent=1 // pred_region
      _
    $region29: #{actor_critic_forward.1} parent=1 // pred_fallthru
      _
    %131 = vsyncpa [#allocation3], 1
    %132 = vsyncpa [#allocation5], 1

</llo_original>
